<compile_context>
chip_gen: v7x
topology: tpu7x:2x2x1
jax: 0.10.0
libtpu: 0.0.40
codegen_flags: <defaults>
</compile_context>

<pallas_src>
import jax
import jax.numpy as jnp
from jax.experimental import pallas as pl
from jax.experimental.pallas import tpu as pltpu

_EPS = 1e-6
_VMEM_LIMIT = 32 * 1024 * 1024          # explicit scoped-VMEM budget (safe on v5e/v6e/v7x)
_MAX_TILE_BYTES = 4 * 1024 * 1024       # f32 tile ceiling -> <=16 MiB with double-buffered in+out
_FULL_BLOCK_MAX_ELEMS = 512 * 1024      # <= 2 MiB f32 -> single-block single-launch path
_COL_CANDIDATES = (4096, 2048, 1024, 512, 256, 128)


# ---------------------------------------------------------------------------
# Backward pass 1: tiled reduction to per-lane partial sums / sums-of-squares.
# ---------------------------------------------------------------------------
def _partial_sums_kernel(g_ref, psum_ref, psq_ref):
    k = pl.program_id(0)

    @pl.when(k == 0)
    def _init():
        psum_ref[...] = jnp.zeros_like(psum_ref)
        psq_ref[...] = jnp.zeros_like(psq_ref)

    g = g_ref[...].astype(jnp.float32)                      # (TR, C)
    psum_ref[...] += jnp.sum(g, axis=0, keepdims=True)      # (1, C) per-lane partials (XLU)
    psq_ref[...] += jnp.sum(g * g, axis=0, keepdims=True)   # (1, C)


# ---------------------------------------------------------------------------
# Backward pass 2: apply (g - mean) * inv_std; lane-dense output tiles.
# ---------------------------------------------------------------------------
def _apply_kernel(stats_ref, g_ref, o_ref):
    mean = stats_ref[0]      # scalar read from SMEM, broadcast into vregs
    inv_std = stats_ref[1]   # 1 / (std + eps) precomputed -> no per-element divide
    g = g_ref[...].astype(jnp.float32)
    o_ref[...] = ((g - mean) * inv_std).astype(o_ref.dtype)


# ---------------------------------------------------------------------------
# Small-tensor path: whole array in one block, one kernel launch.
# ---------------------------------------------------------------------------
def _make_full_kernel(n_valid):
    nf = float(n_valid)

    def kernel(g_ref, o_ref):
        g = g_ref[...].astype(jnp.float32)
        mean = jnp.sum(g) / nf
        centered = g - mean
        # unbiased (ddof=1); NaN for n==1, matching torch.std
        var = jnp.maximum(jnp.sum(centered * centered) / (nf - 1.0), 0.0)
        inv_std = 1.0 / (jnp.sqrt(var) + _EPS)   # one scalar divide, then vector multiply
        o_ref[...] = (centered * inv_std).astype(o_ref.dtype)

    return kernel


def _grad_norm_full(g):
    n = int(g.size)
    shape2d = _choose_2d(n)
    if shape2d is not None:
        g2 = g.reshape(shape2d)            # lane-packed (rows%8==0, cols%128==0) view
    elif g.ndim >= 2:
        g2 = g
    else:
        g2 = g.reshape(1, -1)
    ndim = g2.ndim
    out = pl.pallas_call(
        _make_full_kernel(n),
        out_shape=jax.ShapeDtypeStruct(g2.shape, g.dtype),
        in_specs=[pl.BlockSpec(g2.shape, lambda *_: (0,) * ndim)],
        out_specs=pl.BlockSpec(g2.shape, lambda *_: (0,) * ndim),
        compiler_params=pltpu.CompilerParams(vmem_limit_bytes=_VMEM_LIMIT),
    )(g2)
    return out.reshape(g.shape)


# ---------------------------------------------------------------------------
# Lane-dense tiled path.
# ---------------------------------------------------------------------------
def _choose_2d(n):
    """Pick a lane-dense 2-D shape (rows, cols): cols % 128 == 0, rows % 8 == 0."""
    for cols in _COL_CANDIDATES:
        if n % cols == 0 and (n // cols) % 8 == 0:
            return n // cols, cols
    return None


def _choose_tile_rows(rows, cols):
    """Largest row-tile (multiple of 8, divides rows) within the f32 tile budget."""
    max_rows = max(8, (_MAX_TILE_BYTES // (cols * 4)) // 8 * 8)
    tr = min(rows, max_rows)
    while rows % tr != 0:
        tr -= 8
    return tr


def _grad_norm_tiled_2d(g2, n_valid):
    """Two-pass normalization over a lane-dense (rows, cols) slab.

    `n_valid` is the true element count (g2 may carry zero padding at the end;
    zeros contribute nothing to sum / sum-of-squares so the stats stay exact).
    """
    rows, cols = g2.shape
    n_padded = rows * cols
    itemsize = jnp.dtype(g2.dtype).itemsize
    tr = _choose_tile_rows(rows, cols)
    grid = (rows // tr,)

    # Pass 1: reduction (accumulator outputs resident in VMEM; axis "arbitrary").
    psum, psq = pl.pallas_call(
        _partial_sums_kernel,
        out_shape=(jax.ShapeDtypeStruct((1, cols), jnp.float32),
                   jax.ShapeDtypeStruct((1, cols), jnp.float32)),
        grid=grid,
        in_specs=[pl.BlockSpec((tr, cols), lambda k: (k, 0))],
        out_specs=(pl.BlockSpec((1, cols), lambda k: (0, 0)),
                   pl.BlockSpec((1, cols), lambda k: (0, 0))),
        compiler_params=pltpu.CompilerParams(
            dimension_semantics=("arbitrary",),
            vmem_limit_bytes=_VMEM_LIMIT),
        cost_estimate=pl.CostEstimate(
            flops=3 * n_padded, transcendentals=0,
            bytes_accessed=n_padded * itemsize + 2 * cols * 4),
    )(g2)

    # Finalize the two scalars in plain JAX (a handful of scalar flops).
    # Variance is clamped at 0 to absorb round-off (unbiased ddof=1, like torch.std).
    nf = jnp.float32(n_valid)
    total = jnp.sum(psum)
    total_sq = jnp.sum(psq)
    mean = total / nf
    var = jnp.maximum((total_sq - total * mean) / (nf - 1.0), 0.0)
    inv_std = 1.0 / (jnp.sqrt(var) + _EPS)
    stats = jnp.stack([mean, inv_std]).astype(jnp.float32)   # (2,) -> SMEM scalars

    # Pass 2: elementwise normalize; "parallel" grid axis, lane-dense stores.
    out2 = pl.pallas_call(
        _apply_kernel,
        out_shape=jax.ShapeDtypeStruct((rows, cols), g2.dtype),
        grid=grid,
        in_specs=[pl.BlockSpec(memory_space=pltpu.MemorySpace.SMEM),
                  pl.BlockSpec((tr, cols), lambda k: (k, 0))],
        out_specs=pl.BlockSpec((tr, cols), lambda k: (k, 0)),
        compiler_params=pltpu.CompilerParams(
            dimension_semantics=("parallel",),
            vmem_limit_bytes=_VMEM_LIMIT),
        cost_estimate=pl.CostEstimate(
            flops=2 * n_padded, transcendentals=0,
            bytes_accessed=2 * n_padded * itemsize + 8),
    )(stats, g2)
    return out2


def _grad_norm_padded(g, n):
    """Large gradients whose element count is not lane-dense: pad, run, slice."""
    cols = 1024
    rows = ((pl.cdiv(n, cols) + 7) // 8) * 8
    pad = rows * cols - n
    flat = jnp.pad(jnp.ravel(g), (0, pad))       # zeros: exact for sum / sum-of-squares
    out2 = _grad_norm_tiled_2d(flat.reshape(rows, cols), n)
    # TODO(synk): the pad + tail-slice copies cost ~2N extra HBM bytes for awkward
    # sizes; an in-kernel masked ragged-edge tile would remove them.
    return out2.reshape(-1)[:n].reshape(g.shape)


def normalize_gradient(g):
    """(g - mean(g)) / (std_unbiased(g) + 1e-6), computed with Pallas TPU kernels."""
    n = int(g.size)
    if n == 0:
        return g
    if n <= _FULL_BLOCK_MAX_ELEMS:
        return _grad_norm_full(g)                 # one launch, one read + one write
    shape2d = _choose_2d(n)
    if shape2d is not None:
        rows, cols = shape2d
        return _grad_norm_tiled_2d(g.reshape(rows, cols), n).reshape(g.shape)
    return _grad_norm_padded(g, n)


# ---------------------------------------------------------------------------
# Module equivalent: identity forward, gradient-normalizing backward.
# ---------------------------------------------------------------------------
@jax.custom_vjp
def gradient_normalization_layer(x):
    return x                     # identity forward: no kernel, no HBM round trip


def _gnl_fwd(x):
    return x, None


def _gnl_bwd(_, g):
    return (normalize_gradient(g),)


gradient_normalization_layer.defvjp(_gnl_fwd, _gnl_bwd)


if __name__ == "__main__":
    key = jax.random.PRNGKey(0)
    kx, kc, kbig, kodd = jax.random.split(key, 4)

    # NCHW input consistent with a conv-style module: batch=2, channels=4, 16x16.
    x = jax.random.normal(kx, (2, 4, 16, 16), dtype=jnp.float32)
    cot = jax.random.normal(kc, (2, 4, 16, 16), dtype=jnp.float32)   # incoming gradient

    # Forward: identity.
    y = gradient_normalization_layer(x)
    jax.block_until_ready(y)
    assert y.shape == x.shape and y.dtype == x.dtype
    assert bool(jnp.allclose(y, x)), "forward must be identity"

    # Backward: VJP with cotangent `cot` (small -> single full-block kernel).
    _, vjp_fn = jax.vjp(gradient_normalization_layer, x)
    (gx,) = vjp_fn(cot)
    jax.block_until_ready(gx)
    ref = (cot - jnp.mean(cot)) / (jnp.std(cot, ddof=1) + _EPS)
    assert gx.shape == cot.shape and gx.dtype == cot.dtype
    assert bool(jnp.allclose(gx, ref, rtol=1e-3, atol=1e-4)), "backward mismatch (small)"

    # Tiled two-pass path (multi-step grid reduction + parallel apply).
    gbig = jax.random.normal(kbig, (2048, 2048), dtype=jnp.float32)
    obig = normalize_gradient(gbig)
    jax.block_until_ready(obig)
    rbig = (gbig - jnp.mean(gbig)) / (jnp.std(gbig, ddof=1) + _EPS)
    assert bool(jnp.allclose(obig, rbig, rtol=1e-3, atol=1e-4)), "backward mismatch (tiled)"

    # Padded path (large, element count not lane-dense-factorable).
    godd = jax.random.normal(kodd, (1000003,), dtype=jnp.float32)
    oodd = normalize_gradient(godd)
    jax.block_until_ready(oodd)
    rodd = (godd - jnp.mean(godd)) / (jnp.std(godd, ddof=1) + _EPS)
    assert bool(jnp.allclose(oodd, rodd, rtol=1e-3, atol=1e-4)), "backward mismatch (padded)"

    print("KERNEL_OK")
</pallas_src>

<mosaic_0001>
module attributes {stable_mosaic.version = 11 : i64} {
  func.func @kernel(%arg0: memref<8x256xf32, #tpu.memory_space<vmem>>, %arg1: memref<8x256xf32, #tpu.memory_space<vmem>>) attributes {dimension_semantics = [], scalar_prefetch = 0 : i64, scratch_operands = 0 : i64, tpu.core_type = #tpu.core_type<tc>} {
    %c0 = arith.constant 0 : index
    %c0_0 = arith.constant 0 : index
    %0 = vector.load %arg0[%c0, %c0_0] : memref<8x256xf32, #tpu.memory_space<vmem>>, vector<8x256xf32>
    %1 = vector.shape_cast %0 : vector<8x256xf32> to vector<1x8x256xf32>
    %cst = arith.constant dense<0.000000e+00> : vector<1xf32>
    %2 = vector.multi_reduction <add>, %1, %cst [1, 2] : vector<1x8x256xf32> to vector<1xf32>
    %3 = vector.shape_cast %2 : vector<1xf32> to vector<1x1x1xf32>
    %4 = vector.extract %3[0, 0, 0] : f32 from vector<1x1x1xf32>
    %cst_1 = arith.constant 2.048000e+03 : f32
    %5 = arith.divf %4, %cst_1 : f32
    %6 = vector.broadcast %5 : f32 to vector<8x256xf32>
    %7 = arith.subf %0, %6 : vector<8x256xf32>
    %8 = arith.mulf %7, %7 : vector<8x256xf32>
    %9 = vector.shape_cast %8 : vector<8x256xf32> to vector<1x8x256xf32>
    %cst_2 = arith.constant dense<0.000000e+00> : vector<1xf32>
    %10 = vector.multi_reduction <add>, %9, %cst_2 [1, 2] : vector<1x8x256xf32> to vector<1xf32>
    %11 = vector.shape_cast %10 : vector<1xf32> to vector<1x1x1xf32>
    %12 = vector.extract %11[0, 0, 0] : f32 from vector<1x1x1xf32>
    %cst_3 = arith.constant 2.047000e+03 : f32
    %13 = arith.divf %12, %cst_3 : f32
    %cst_4 = arith.constant 0.000000e+00 : f32
    %14 = arith.maximumf %13, %cst_4 : f32
    %15 = math.sqrt %14 : f32
    %cst_5 = arith.constant 9.99999997E-7 : f32
    %16 = arith.addf %15, %cst_5 : f32
    %cst_6 = arith.constant 1.000000e+00 : f32
    %17 = arith.divf %cst_6, %16 : f32
    %18 = vector.broadcast %17 : f32 to vector<8x256xf32>
    %19 = arith.mulf %7, %18 : vector<8x256xf32>
    %c0_7 = arith.constant 0 : index
    %c0_8 = arith.constant 0 : index
    %20 = vector.load %arg1[%c0_7, %c0_8] : memref<8x256xf32, #tpu.memory_space<vmem>>, vector<8x256xf32>
    tpu.vector_store %arg1[%c0_7, %c0_8], %19 {strides = array<i32>} : memref<8x256xf32, #tpu.memory_space<vmem>>, vector<8x256xf32>,
    return
  }
}

</mosaic_0001>

<llo_original>
// kernel: tpu_custom_call.1
$region0: #{tpu_custom_call.1}
  #allocation0 [shape = 'u32[]', space=smem, size = 0x4, offset = 0x4, fixed_abs, tag = 'smem constant byte address 0x4 - core index']
  #allocation1 [shape = 'u32[144,128]{1,0:T(1,128)}', space=vmem, size = 0x12000, scoped, tag = 'internal scratch']
  %s0 = inlined_call_operand.hbm [shape: f32[8,256], index: 0, kind: input, shape index: {}]
  %s1 = inlined_call_operand.hbm [shape: f32[8,256], index: 1, kind: output, shape index: {}]
  %s2 = sld [smem:[#allocation0]]
  $region18: #{tpu_custom_call.1} parent=0
    _
  %s4 = ssub.s32 1, %s2
  %s5 = scalar_select 0, %s4, %s2
  $region1: #{tpu_custom_call.1} parent=0
    #allocation2 [shape = 'u8[8192]{0}', space=vmem, size = 0x2000, scoped, tag = 'input window, operand 0, single buffered']
    #allocation3 [shape = 's32[1]{0}', space=sflag, size = 0x4, scoped, tag = 'scoped memory for tpu_custom_call.1']
    #allocation4 [shape = 's32[1]{0}', space=sflag, size = 0x4, scoped, tag = 'scoped memory for tpu_custom_call.1']
    #allocation5 [shape = 'u8[8192]{0}', space=vmem, size = 0x2000, scoped, tag = 'output window, operand 0, single buffered']
    %6 = vsyncpa [#allocation3], 0
    %7 = vsyncpa [#allocation4], 0
    // Predicated region
    $region2: #{tpu_custom_call.1} parent=1 // pred_check
      _
    $region3: #{tpu_custom_call.1} parent=1 // pred_check_branch
      %9 = sbr.rel (0) target = $region5
    $region4: #{tpu_custom_call.1} parent=1 // pred_region
      %s11 = ssub.s32 256, 256
      %12 = vsyncadd [#allocation3], %s11
      %s14 = sshll.u32 [#allocation2], 4
      %s15 = int_to_ptr.vmem [resolvable:$true] %s14
      %17 = dma.hbm_to_vmem [thread:$0]  %s0, 256, %s15, [#allocation3]
    $region5: #{tpu_custom_call.1} parent=1 // pred_fallthru
      _
    // Predicated region
    $region6: #{tpu_custom_call.1} parent=1 // pred_check
      _
    $region7: #{tpu_custom_call.1} parent=1 // pred_check_branch
      %19 = sbr.rel (0) target = $region9
    $region8: #{tpu_custom_call.1} parent=1 // pred_region
      %20 = dma.done [#allocation3], 256
    $region9: #{tpu_custom_call.1} parent=1 // pred_fallthru
      _
    %v21 = vld [vmem:[#allocation2] sm:$0xff]
    %v22 = vld [vmem:[#allocation2 + $0x8] sm:$0xff]
    %v23 = vadd.f32 %v21, %v22
    %24 = vadd.xlane.f32.xlu0 %v23
    %v25 = vpop.xlane.xlu0 %24
    %v26 = vrot.slane %v25, 4
    %v27 = vadd.f32 %v25, %v26
    %v28 = vrot.slane %v27, 2
    %v29 = vadd.f32 %v27, %v28
    %v30 = vrot.slane %v29, 1
    %v31 = vadd.f32 %v29, %v30
    %s32 = vtos %v31
    %v33 = vrcp.pop 2048.0
    %s34 = vtos %v33
    %s35 = smul.f32 %s32, %s34
    %v36 = vstv %s35
    %v37 = vsub.f32 %v21, %v36
    %v38 = vsub.f32 %v22, %v36
    %v39 = vmul.f32 %v37, %v37
    %v40 = vmul.f32 %v38, %v38
    %v41 = vadd.f32 %v39, %v40
    %42 = vadd.xlane.f32.xlu0 %v41
    %v43 = vpop.xlane.xlu0 %42
    %v44 = vrot.slane %v43, 4
    %v45 = vadd.f32 %v43, %v44
    %v46 = vrot.slane %v45, 2
    %v47 = vadd.f32 %v45, %v46
    %v48 = vrot.slane %v47, 1
    %v49 = vadd.f32 %v47, %v48
    %s50 = vtos %v49
    %v51 = vrcp.pop 2047.0
    %s52 = vtos %v51
    %s53 = smul.f32 %s50, %s52
    %s54 = smax.f32 %s53, 0.0
    %v55 = vstv %s54
    %v56 = vrsqrt.pop %v55
    %v57 = vmul.f32 %v55, %v56
    %vm58 = vcmp.eq.f32.partialorder %v55, inf
    %v59 = vsel %vm58, %v55, %v57
    %vm60 = vcmp.eq.f32.partialorder %v55, 0.0
    %v61 = vand.u32 %v55, 2147483648
    %v62 = vsel %vm60, %v61, %v59
    %s63 = vtos %v62
    %s64 = sadd.f32 %s63, 1e-06
    %v65 = vstv %s64
    %v66 = vrcp.pop %v65
    %s67 = vtos %v66
    %v68 = vstv %s67
    %v69 = vmul.f32 %v37, %v68
    %v70 = vmul.f32 %v38, %v68
    %71 = vst [vmem:[#allocation5] sm:$0xff] %v69
    %72 = vst [vmem:[#allocation5 + $0x8] sm:$0xff] %v70
    // Predicated region
    $region10: #{tpu_custom_call.1} parent=1 // pred_check
      _
    $region11: #{tpu_custom_call.1} parent=1 // pred_check_branch
      %74 = sbr.rel (0) target = $region13
    $region12: #{tpu_custom_call.1} parent=1 // pred_region
      %s76 = ssub.s32 256, 256
      %77 = vsyncadd [#allocation4], %s76
      %s79 = sshll.u32 [#allocation5], 4
      %s80 = int_to_ptr.vmem [resolvable:$true] %s79
      %82 = dma.vmem_to_hbm [thread:$0]  %s80, 256, %s1, [#allocation4]
    $region13: #{tpu_custom_call.1} parent=1 // pred_fallthru
      _
    // Predicated region
    $region14: #{tpu_custom_call.1} parent=1 // pred_check
      _
    $region15: #{tpu_custom_call.1} parent=1 // pred_check_branch
      %84 = sbr.rel (0) target = $region17
    $region16: #{tpu_custom_call.1} parent=1 // pred_region
      %85 = dma.done [#allocation4], 256
    $region17: #{tpu_custom_call.1} parent=1 // pred_fallthru
      _
    %86 = vsyncpa [#allocation3], 1
    %87 = vsyncpa [#allocation4], 1

</llo_original>
